<compile_context>
chip_gen: v7x
topology: tpu7x:2x2x1
jax: 0.10.0
libtpu: 0.0.40
codegen_flags: <defaults>
</compile_context>

<pallas_src>
import jax
import jax.numpy as jnp
from jax.experimental import pallas as pl
from jax.experimental.pallas import tpu as pltpu


def _round_up(a: int, m: int) -> int:
    return (a + m - 1) // m * m


def _cdiv(a: int, b: int) -> int:
    return (a + b - 1) // b


def _linear_relu_kernel(x_ref, w_ref, b_ref, o_ref):
    """Single-K-block path: one MXU dot, bias + ReLU fused, no scratch."""
    y = jnp.dot(x_ref[...], w_ref[...], preferred_element_type=jnp.float32)
    o_ref[...] = jnp.maximum(y + b_ref[...], 0.0).astype(o_ref.dtype)


def _linear_relu_ktiled_kernel(x_ref, w_ref, b_ref, o_ref):
    """K-tiled path: accumulate straight into the resident f32 output block."""
    k = pl.program_id(2)

    @pl.when(k == 0)
    def _():
        o_ref[...] = jnp.zeros_like(o_ref)

    o_ref[...] += jnp.dot(
        x_ref[...], w_ref[...], preferred_element_type=jnp.float32
    )

    @pl.when(k == pl.num_programs(2) - 1)
    def _():
        o_ref[...] = jnp.maximum(o_ref[...] + b_ref[...], 0.0)


def _maybe_pad(a, pads):
    if all(p == (0, 0) for p in pads):
        return a
    return jnp.pad(a, pads)


def feature_encoder_forward(x, w_t, b, *, tm: int = 256, tn: int = 512,
                            tk: int = 512, use_bf16: bool = False):
    """x: (B, in_dim); w_t: (in_dim, out_dim) == PyTorch W.T; b: (out_dim,).

    Returns relu(x @ w_t + b) as float32, shape (B, out_dim).
    """
    B, in_dim = x.shape
    assert w_t.shape[0] == in_dim
    out_dim = w_t.shape[1]

    sub = 16 if use_bf16 else 8  # bf16 packs 2 rows/sublane -> 16-row alignment

    # --- Balanced M tiling; >= 2 tiles when B > 8 so both v7x cores get work.
    n_m = max(1, _cdiv(B, tm))
    if B > 8:
        n_m = max(n_m, 2)
    tm_eff = _round_up(_cdiv(B, n_m), sub)
    rows_p = n_m * tm_eff

    # --- Balanced, lane-dense N tiling (bounds VMEM independent of out_dim).
    out_p = _round_up(out_dim, 128)
    n_n = max(1, _cdiv(out_p, tn))
    tn_eff = _round_up(_cdiv(out_p, n_n), 128)
    out_pp = n_n * tn_eff

    # --- K: single full-K dot when it fits one block, else balanced K tiling.
    in_p = _round_up(in_dim, 128)
    n_k = max(1, _cdiv(in_p, tk))
    tk_eff = _round_up(_cdiv(in_p, n_k), 128)
    in_pp = n_k * tk_eff

    # Zero padding keeps the accumulation exact; zero bias padding makes padded
    # output columns relu(0)=0; padded rows/cols are sliced off before return.
    x_pad = _maybe_pad(x, ((0, rows_p - B), (0, in_pp - in_dim)))
    w_pad = _maybe_pad(w_t, ((0, in_pp - in_dim), (0, out_pp - out_dim)))
    if use_bf16:
        x_pad = x_pad.astype(jnp.bfloat16)
        w_pad = w_pad.astype(jnp.bfloat16)
    bias_pad = _maybe_pad(b, ((0, out_pp - out_dim),)).reshape(1, out_pp)
    bias_pad = bias_pad.astype(jnp.float32)

    if n_k == 1:
        kernel = _linear_relu_kernel
        grid = (n_m, n_n)
        in_specs = [
            pl.BlockSpec((tm_eff, in_pp), lambda i, j: (i, 0)),   # x: M-tiled
            pl.BlockSpec((in_pp, tn_eff), lambda i, j: (0, j)),   # w: resident over M
            pl.BlockSpec((1, tn_eff), lambda i, j: (0, j)),       # bias
        ]
        out_spec = pl.BlockSpec((tm_eff, tn_eff), lambda i, j: (i, j))
        dims = ("parallel", "parallel")
    else:
        kernel = _linear_relu_ktiled_kernel
        grid = (n_m, n_n, n_k)                                    # reduction last
        in_specs = [
            pl.BlockSpec((tm_eff, tk_eff), lambda i, j, k: (i, k)),
            pl.BlockSpec((tk_eff, tn_eff), lambda i, j, k: (k, j)),
            pl.BlockSpec((1, tn_eff), lambda i, j, k: (0, j)),
        ]
        out_spec = pl.BlockSpec((tm_eff, tn_eff), lambda i, j, k: (i, j))
        dims = ("parallel", "parallel", "arbitrary")

    out = pl.pallas_call(
        kernel,
        out_shape=jax.ShapeDtypeStruct((rows_p, out_pp), jnp.float32),
        grid=grid,
        in_specs=in_specs,
        out_specs=out_spec,
        compiler_params=pltpu.CompilerParams(dimension_semantics=dims),
    )(x_pad, w_pad, bias_pad)

    return out[:B, :out_dim]


def _reference(x, w_t, b):
    return jnp.maximum(x.astype(jnp.float32) @ w_t.astype(jnp.float32) + b, 0.0)


if __name__ == "__main__":
    key = jax.random.PRNGKey(0)

    # Case 1: Feature_Encoder(input_dim=32, output_dim=20) default shapes.
    batch, input_dim, output_dim = 8, 32, 20
    kx, kw, kb = jax.random.split(key, 3)
    x = jax.random.normal(kx, (batch, input_dim), dtype=jnp.float32)
    w = jax.random.normal(kw, (output_dim, input_dim), dtype=jnp.float32) * 0.1
    b = jax.random.normal(kb, (output_dim,), dtype=jnp.float32) * 0.1

    out = jax.block_until_ready(feature_encoder_forward(x, w.T, b))
    ref = _reference(x, w.T, b)
    assert out.shape == (batch, output_dim)
    assert jnp.allclose(out, ref, atol=1e-5, rtol=1e-5)

    # Case 2: M tiling (n_m=2 for the v7x rule) + padding in every dim,
    # single-K fast path (n_k == 1, weight fully resident).
    batch2, input_dim2, output_dim2 = 136, 200, 20
    k2x, k2w, k2b = jax.random.split(jax.random.PRNGKey(1), 3)
    x2 = jax.random.normal(k2x, (batch2, input_dim2), dtype=jnp.float32)
    w2 = jax.random.normal(k2w, (output_dim2, input_dim2), dtype=jnp.float32) * 0.05
    b2 = jax.random.normal(k2b, (output_dim2,), dtype=jnp.float32) * 0.05

    out2 = jax.block_until_ready(feature_encoder_forward(x2, w2.T, b2))
    ref2 = _reference(x2, w2.T, b2)
    assert out2.shape == (batch2, output_dim2)
    assert jnp.allclose(out2, ref2, atol=1e-4, rtol=1e-4)

    # Case 3: exercises the K-tiled accumulate-into-output kernel plus N and M
    # tiling (grid = (3, 3, 3) at these tile sizes).
    batch3, input_dim3, output_dim3 = 96, 700, 300
    k3x, k3w, k3b = jax.random.split(jax.random.PRNGKey(2), 3)
    x3 = jax.random.normal(k3x, (batch3, input_dim3), dtype=jnp.float32)
    w3 = jax.random.normal(k3w, (output_dim3, input_dim3), dtype=jnp.float32) * 0.05
    b3 = jax.random.normal(k3b, (output_dim3,), dtype=jnp.float32) * 0.05

    out3 = jax.block_until_ready(
        feature_encoder_forward(x3, w3.T, b3, tm=32, tn=128, tk=256))
    ref3 = _reference(x3, w3.T, b3)
    assert out3.shape == (batch3, output_dim3)
    assert jnp.allclose(out3, ref3, atol=1e-4, rtol=1e-4)

    # Case 4: opt-in bf16 MXU path (f32 accumulation/output), relaxed tolerance.
    out4 = jax.block_until_ready(
        feature_encoder_forward(x2, w2.T, b2, use_bf16=True))
    assert out4.shape == (batch2, output_dim2)
    assert jnp.allclose(out4, ref2, atol=5e-2, rtol=5e-2)

    print("KERNEL_OK")
</pallas_src>

<mosaic_0001>
module attributes {stable_mosaic.version = 11 : i64} {
  func.func @_linear_relu_kernel(%arg0: i32, %arg1: i32, %arg2: memref<8x128xf32, #tpu.memory_space<vmem>>, %arg3: memref<128x128xf32, #tpu.memory_space<vmem>>, %arg4: memref<1x128xf32, #tpu.memory_space<vmem>>, %arg5: memref<8x128xf32, #tpu.memory_space<vmem>>) attributes {dimension_semantics = [#tpu.dimension_semantics<parallel>, #tpu.dimension_semantics<parallel>], iteration_bounds = array<i64: 1, 1>, scalar_prefetch = 0 : i64, scratch_operands = 0 : i64, tpu.core_type = #tpu.core_type<tc>, window_params = [{transform_indices = @transform_0, window_bounds = array<i64: 8, 128>}, {transform_indices = @transform_1, window_bounds = array<i64: 128, 128>}, {transform_indices = @transform_2, window_bounds = array<i64: 1, 128>}, {transform_indices = @transform_3, window_bounds = array<i64: 8, 128>}]} {
    %c0 = arith.constant 0 : index
    %c0_0 = arith.constant 0 : index
    %0 = vector.load %arg2[%c0, %c0_0] : memref<8x128xf32, #tpu.memory_space<vmem>>, vector<8x128xf32>
    %c0_1 = arith.constant 0 : index
    %c0_2 = arith.constant 0 : index
    %1 = vector.load %arg3[%c0_1, %c0_2] : memref<128x128xf32, #tpu.memory_space<vmem>>, vector<128x128xf32>
    %cst = arith.constant dense<0.000000e+00> : vector<8x128xf32>
    %2 = tpu.matmul %0, %1, %cst {dimension_numbers = #tpu.dot_dimension_numbers<[1], [0], [0], [1], [0, 0, 1, 1], [], []>} : vector<8x128xf32>, vector<128x128xf32>, vector<8x128xf32> -> vector<8x128xf32>
    %c0_3 = arith.constant 0 : index
    %c0_4 = arith.constant 0 : index
    %3 = vector.load %arg4[%c0_3, %c0_4] : memref<1x128xf32, #tpu.memory_space<vmem>>, vector<1x128xf32>
    %4 = vector.broadcast %3 : vector<1x128xf32> to vector<8x128xf32>
    %5 = arith.addf %2, %4 : vector<8x128xf32>
    %cst_5 = arith.constant 0.000000e+00 : f32
    %6 = vector.broadcast %cst_5 : f32 to vector<8x128xf32>
    %7 = arith.maximumf %5, %6 : vector<8x128xf32>
    %c0_6 = arith.constant 0 : index
    %c0_7 = arith.constant 0 : index
    %8 = vector.load %arg5[%c0_6, %c0_7] : memref<8x128xf32, #tpu.memory_space<vmem>>, vector<8x128xf32>
    tpu.vector_store %arg5[%c0_6, %c0_7], %7 {strides = array<i32>} : memref<8x128xf32, #tpu.memory_space<vmem>>, vector<8x128xf32>,
    return
  }
  func.func @transform_0(%arg0: i32, %arg1: i32) -> (i32, i32) {
    %c0_i32 = arith.constant 0 : i32
    %c0_i32_0 = arith.constant 0 : i32
    return %arg0, %c0_i32 : i32, i32
  }
  func.func @transform_1(%arg0: i32, %arg1: i32) -> (i32, i32) {
    %c0_i32 = arith.constant 0 : i32
    %c0_i32_0 = arith.constant 0 : i32
    return %c0_i32, %arg1 : i32, i32
  }
  func.func @transform_2(%arg0: i32, %arg1: i32) -> (i32, i32) {
    %c0_i32 = arith.constant 0 : i32
    %c0_i32_0 = arith.constant 0 : i32
    return %c0_i32, %arg1 : i32, i32
  }
  func.func @transform_3(%arg0: i32, %arg1: i32) -> (i32, i32) {
    %c0_i32 = arith.constant 0 : i32
    return %arg0, %arg1 : i32, i32
  }
}

</mosaic_0001>

<llo_original>
// kernel: tpu_custom_call.1
$region0: #{tpu_custom_call.1}
  #allocation0 [shape = 'u32[]', space=smem, size = 0x4, offset = 0x4, fixed_abs, tag = 'smem constant byte address 0x4 - core index']
  #allocation1 [shape = 'u32[144,128]{1,0:T(1,128)}', space=vmem, size = 0x12000, scoped, tag = 'internal scratch']
  %s0 = inlined_call_operand.hbm [shape: f32[8,128], index: 0, kind: input, shape index: {}]
  %s1 = inlined_call_operand.hbm [shape: f32[128,128], index: 1, kind: input, shape index: {}]
  %s2 = inlined_call_operand.vmem [shape: f32[1,128], index: 2, kind: input, shape index: {}]
  %s3 = inlined_call_operand.hbm [shape: f32[8,128], index: 3, kind: output, shape index: {}]
  %s4 = sld [smem:[#allocation0]]
  $region30: #{tpu_custom_call.1} parent=0
    _
  %s6 = ssub.s32 1, %s4
  %s7 = scalar_select 0, %s6, %s4
  $region1: #{tpu_custom_call.1} parent=0
    #allocation2 [shape = 'u8[4096]{0}', space=vmem, size = 0x1000, scoped, tag = 'input window, operand 0, single buffered']
    #allocation3 [shape = 's32[1]{0}', space=sflag, size = 0x4, scoped, tag = 'scoped memory for tpu_custom_call.1']
    #allocation4 [shape = 's32[1]{0}', space=sflag, size = 0x4, scoped, tag = 'scoped memory for tpu_custom_call.1']
    #allocation5 [shape = 'u8[65536]{0}', space=vmem, size = 0x10000, scoped, tag = 'input window, operand 1, single buffered']
    #allocation6 [shape = 's32[1]{0}', space=sflag, size = 0x4, scoped, tag = 'scoped memory for tpu_custom_call.1']
    #allocation7 [shape = 'u8[4096]{0}', space=vmem, size = 0x1000, scoped, tag = 'output window, operand 0, single buffered']
    %8 = vsyncpa [#allocation3], 0
    %9 = vsyncpa [#allocation6], 0
    %10 = vsyncpa [#allocation4], 0
    // Predicated region
    $region2: #{tpu_custom_call.1} parent=1 // pred_check
      _
    $region3: #{tpu_custom_call.1} parent=1 // pred_check_branch
      %12 = sbr.rel (0) target = $region5
    $region4: #{tpu_custom_call.1} parent=1 // pred_region
      %s14 = ssub.s32 128, 128
      %15 = vsyncadd [#allocation3], %s14
      %s17 = sshll.u32 [#allocation2], 4
      %s18 = int_to_ptr.vmem [resolvable:$true] %s17
      %20 = dma.hbm_to_vmem [thread:$0]  %s0, 128, %s18, [#allocation3]
    $region5: #{tpu_custom_call.1} parent=1 // pred_fallthru
      _
    // Predicated region
    $region6: #{tpu_custom_call.1} parent=1 // pred_check
      _
    $region7: #{tpu_custom_call.1} parent=1 // pred_check_branch
      %22 = sbr.rel (0) target = $region9
    $region8: #{tpu_custom_call.1} parent=1 // pred_region
      %s24 = ssub.s32 2048, 2048
      %25 = vsyncadd [#allocation6], %s24
      %s26 = sshll.u32 [#allocation5], 4
      %s27 = int_to_ptr.vmem [resolvable:$true] %s26
      %32 = dma.hbm_to_vmem [thread:$0]  %s1, 2048, %s27, [#allocation6], 128, 128, 8
    $region9: #{tpu_custom_call.1} parent=1 // pred_fallthru
      _
    // Predicated region
    $region10: #{tpu_custom_call.1} parent=1 // pred_check
      _
    $region11: #{tpu_custom_call.1} parent=1 // pred_check_branch
      %34 = sbr.rel (0) target = $region13
    $region12: #{tpu_custom_call.1} parent=1 // pred_region
      _
    $region13: #{tpu_custom_call.1} parent=1 // pred_fallthru
      _
    // Predicated region
    $region14: #{tpu_custom_call.1} parent=1 // pred_check
      _
    $region15: #{tpu_custom_call.1} parent=1 // pred_check_branch
      %36 = sbr.rel (0) target = $region17
    $region16: #{tpu_custom_call.1} parent=1 // pred_region
      %37 = dma.done [#allocation3], 128
    $region17: #{tpu_custom_call.1} parent=1 // pred_fallthru
      _
    // Predicated region
    $region18: #{tpu_custom_call.1} parent=1 // pred_check
      _
    $region19: #{tpu_custom_call.1} parent=1 // pred_check_branch
      %39 = sbr.rel (0) target = $region21
    $region20: #{tpu_custom_call.1} parent=1 // pred_region
      %40 = dma.done [#allocation6], 2048
    $region21: #{tpu_custom_call.1} parent=1 // pred_fallthru
      _
    %v41 = vld [vmem:[#allocation2] sm:$0xff]
    %v42 = vld [vmem:[#allocation5] sm:$0xff]
    %v43 = vld [vmem:[#allocation5 + $0x8] sm:$0xff]
    %v44 = vld [vmem:[#allocation5 + $0x10] sm:$0xff]
    %v45 = vld [vmem:[#allocation5 + $0x18] sm:$0xff]
    %v46 = vld [vmem:[#allocation5 + $0x20] sm:$0xff]
    %v47 = vld [vmem:[#allocation5 + $0x28] sm:$0xff]
    %v48 = vld [vmem:[#allocation5 + $0x30] sm:$0xff]
    %v49 = vld [vmem:[#allocation5 + $0x38] sm:$0xff]
    %v50 = vld [vmem:[#allocation5 + $0x40] sm:$0xff]
    %v51 = vld [vmem:[#allocation5 + $0x48] sm:$0xff]
    %v52 = vld [vmem:[#allocation5 + $0x50] sm:$0xff]
    %v53 = vld [vmem:[#allocation5 + $0x58] sm:$0xff]
    %v54 = vld [vmem:[#allocation5 + $0x60] sm:$0xff]
    %v55 = vld [vmem:[#allocation5 + $0x68] sm:$0xff]
    %v56 = vld [vmem:[#allocation5 + $0x70] sm:$0xff]
    %v57 = vld [vmem:[#allocation5 + $0x78] sm:$0xff]
    %v58 = vld [vmem:[%s2] sm:$0x1]
    %v60 = vlaneseq
    %v61 = vshrl.u32 %v60, 7
    %v62 = vsub.s32 0, %v61
    %v63 = vrot.slane %v58, %v62
    %65 = vmatprep.subr.mxu0 0.0
    %66 = vmatpush1.msra.mxu0 %v42
    %67 = vmatprep.subr.mxu0 0.0
    %68 = vmatpush1.msra.mxu0 %v43
    %69 = vmatprep.subr.mxu0 0.0
    %70 = vmatpush1.msra.mxu0 %v44
    %71 = vmatprep.subr.mxu0 0.0
    %72 = vmatpush1.msra.mxu0 %v45
    %73 = vmatprep.subr.mxu0 0.0
    %74 = vmatpush1.msra.mxu0 %v46
    %75 = vmatprep.subr.mxu0 0.0
    %76 = vmatpush1.msra.mxu0 %v47
    %77 = vmatprep.subr.mxu0 0.0
    %78 = vmatpush1.msra.mxu0 %v48
    %79 = vmatprep.subr.mxu0 0.0
    %80 = vmatpush1.msra.mxu0 %v49
    %81 = vmatprep.subr.mxu0 0.0
    %82 = vmatpush1.msra.mxu0 %v50
    %83 = vmatprep.subr.mxu0 0.0
    %84 = vmatpush1.msra.mxu0 %v51
    %85 = vmatprep.subr.mxu0 0.0
    %86 = vmatpush1.msra.mxu0 %v52
    %87 = vmatprep.subr.mxu0 0.0
    %88 = vmatpush1.msra.mxu0 %v53
    %89 = vmatprep.subr.mxu0 0.0
    %90 = vmatpush1.msra.mxu0 %v54
    %91 = vmatprep.subr.mxu0 0.0
    %92 = vmatpush1.msra.mxu0 %v55
    %93 = vmatprep.subr.mxu0 0.0
    %94 = vmatpush1.msra.mxu0 %v56
    %95 = vmatprep.subr.mxu0 0.0
    %96 = vmatpush1.msra.mxu0 %v57
    %97 = vmatprep.subr.mxu0 0.0
    %98 = vmatpush1.msra.mxu0 0.0
    %99 = vmatprep.subr.mxu0 0.0
    %100 = vmatpush1.msra.mxu0 0.0
    %101 = vmatprep.subr.mxu0 0.0
    %102 = vmatpush1.msra.mxu0 0.0
    %103 = vmatprep.subr.mxu0 0.0
    %104 = vmatpush1.msra.mxu0 0.0
    %105 = vmatprep.subr.mxu0 0.0
    %106 = vmatpush1.msra.mxu0 0.0
    %107 = vmatprep.subr.mxu0 0.0
    %108 = vmatpush1.msra.mxu0 0.0
    %109 = vmatprep.subr.mxu0 0.0
    %110 = vmatpush1.msra.mxu0 0.0
    %111 = vmatprep.subr.mxu0 0.0
    %112 = vmatpush1.msra.mxu0 0.0
    %113 = vmatprep.subr.mxu0 0.0
    %114 = vmatpush1.msra.mxu0 0.0
    %115 = vmatprep.subr.mxu0 0.0
    %116 = vmatpush1.msra.mxu0 0.0
    %117 = vmatprep.subr.mxu0 0.0
    %118 = vmatpush1.msra.mxu0 0.0
    %119 = vmatprep.subr.mxu0 0.0
    %120 = vmatpush1.msra.mxu0 0.0
    %121 = vmatprep.subr.mxu0 0.0
    %122 = vmatpush1.msra.mxu0 0.0
    %123 = vmatprep.subr.mxu0 0.0
    %124 = vmatpush1.msra.mxu0 0.0
    %125 = vmatprep.subr.mxu0 0.0
    %126 = vmatpush1.msra.mxu0 0.0
    %127 = vmatprep.subr.mxu0 0.0
    %128 = vmatpush1.msra.mxu0 0.0
    %129 = vmatprep.mubr.f32.mxu0 0.0
    %130 = vmatmul.mubr.f32.gmra.mrb[0].mxu0 %v41
    %v131 = vpop.f32.mrb[0].mxu0
    %v132 = vadd.f32 %v63, %v131
    %v133 = vpop.f32.mrb[0].mxu0
    %134 = vdwg.mxu0
    %v135 = vmax.f32 %v132, 0.0
    %136 = vst [vmem:[#allocation7] sm:$0xff] %v135
    // Predicated region
    $region22: #{tpu_custom_call.1} parent=1 // pred_check
      _
    $region23: #{tpu_custom_call.1} parent=1 // pred_check_branch
      %138 = sbr.rel (0) target = $region25
    $region24: #{tpu_custom_call.1} parent=1 // pred_region
      %s140 = ssub.s32 128, 128
      %141 = vsyncadd [#allocation4], %s140
      %s143 = sshll.u32 [#allocation7], 4
      %s144 = int_to_ptr.vmem [resolvable:$true] %s143
      %146 = dma.vmem_to_hbm [thread:$0]  %s144, 128, %s3, [#allocation4]
    $region25: #{tpu_custom_call.1} parent=1 // pred_fallthru
      _
    // Predicated region
    $region26: #{tpu_custom_call.1} parent=1 // pred_check
      _
    $region27: #{tpu_custom_call.1} parent=1 // pred_check_branch
      %148 = sbr.rel (0) target = $region29
    $region28: #{tpu_custom_call.1} parent=1 // pred_region
      %149 = dma.done [#allocation4], 128
    $region29: #{tpu_custom_call.1} parent=1 // pred_fallthru
      _
    %150 = vsyncpa [#allocation3], 1
    %151 = vsyncpa [#allocation6], 1
    %152 = vsyncpa [#allocation4], 1

</llo_original>
